<compile_context>
chip_gen: v5e
topology: v5e:2x2
jax: 0.10.0
libtpu: 0.0.40
codegen_flags: <defaults>
</compile_context>

<pallas_src>
import jax
import jax.numpy as jnp
from jax import lax
from jax.experimental import pallas as pl
from jax.experimental.pallas import tpu as pltpu


# ---------------------------------------------------------------------------
# Kernel A: channel-attention scale + channel-wise stats (mean/max over C)
# ---------------------------------------------------------------------------
def _make_channel_att_kernel(hidden):
    def kernel(x_ref, w1t_ref, w2_ref, b2_ref, b1_ref, cs_ref, stats_ref):
        x = x_ref[0].astype(jnp.float32)                       # (C, HW), lane-dense
        c, hw = x.shape

        avg = jnp.sum(x, axis=1, keepdims=True) * (1.0 / hw)   # (C, 1) global avg pool
        mx = jnp.max(x, axis=1, keepdims=True)                 # (C, 1) global max pool

        # Hoist weight loads out of the MLP loop (reused for avg and max paths).
        w1t = w1t_ref[...].astype(jnp.float32)                 # (C, hidden)
        w2 = w2_ref[...].astype(jnp.float32)                   # (C, hidden)
        b2 = b2_ref[...].astype(jnp.float32)                   # (C, 1)

        def mlp(col):                                          # (C, 1) -> (C, 1)
            # Tiny contraction (hidden = C // reduction_ratio): done on the VPU
            # with broadcast multiply + sublane reduce; no lane-sparse MXU matmul.
            out = b2
            for j in range(hidden):                            # static unroll
                hj = jnp.sum(w1t[:, j:j + 1] * col, axis=0, keepdims=True)
                hj = hj + b1_ref[j]                            # (1, 1), bias from SMEM
                hj = hj * jax.nn.sigmoid(hj)                   # SiLU
                out = out + w2[:, j:j + 1] * hj
            return out

        logits = mlp(avg) + mlp(mx)                            # shared MLP, summed
        cscale = jax.nn.sigmoid(logits)                        # (C, 1)
        cs_ref[0] = cscale                                     # tiny output

        # channel-wise mean / max of the channel-attended tensor (xc stays in VMEM;
        # it is never written to HBM).
        xc = x * cscale                                        # (C, HW) lane-dense
        stats_ref[0, 0:1, :] = jnp.sum(xc, axis=0, keepdims=True) * (1.0 / c)
        stats_ref[0, 1:2, :] = jnp.max(xc, axis=0, keepdims=True)

    return kernel


# ---------------------------------------------------------------------------
# Kernel B: 7x7 conv (2 -> 1 channel, no bias) + BatchNorm(inference) + sigmoid
# ---------------------------------------------------------------------------
def _make_spatial_att_kernel(ksize):
    taps = ksize * ksize

    def kernel(pad_ref, wc_ref, bn_ref, smap_ref):
        h = smap_ref.shape[2]
        w = smap_ref.shape[3]
        acc = jnp.zeros((h, w), jnp.float32)
        for cc in range(2):                                    # avg-map, max-map
            for kh in range(ksize):
                for kw in range(ksize):
                    wgt = wc_ref[cc * taps + kh * ksize + kw]  # SMEM scalar weight
                    acc = acc + wgt * pad_ref[0, cc, kh:kh + h, kw:kw + w]
        # BN folded to scale/shift (inference mode), then sigmoid.
        sa = jax.nn.sigmoid(acc * bn_ref[0] + bn_ref[1])
        smap_ref[0, 0] = sa.astype(smap_ref.dtype)

    return kernel


# ---------------------------------------------------------------------------
# Kernel C: out = x * channel_scale * spatial_map (lane-dense broadcast multiply)
# ---------------------------------------------------------------------------
def _apply_attention_kernel(x_ref, cs_ref, s_ref, o_ref):
    x = x_ref[0].astype(jnp.float32)                           # (C, HW)
    xc = x * cs_ref[0]                                         # recompute xc in-register
    o_ref[0] = (xc * s_ref[0]).astype(o_ref.dtype)             # (1, HW) broadcast


# ---------------------------------------------------------------------------
# Wrapper
# ---------------------------------------------------------------------------
def cbam_forward(x, params, *, reduction_ratio=16, kernel_size=7, bn_eps=1e-5):
    """CBAM forward pass (channel attention then spatial attention), NCHW in/out.

    params:
      mlp_w1 (C//r, C), mlp_b1 (C//r,), mlp_w2 (C, C//r), mlp_b2 (C,)
      conv_w (1, 2, k, k)                       # spatial-attention conv, bias=False
      bn_gamma, bn_beta, bn_mean, bn_var        # BatchNorm2d(1) parameters (scalars)
    """
    assert kernel_size in (3, 7), "kernel size must be 3 or 7"
    pad = 3 if kernel_size == 7 else 1
    n, c, h, w = x.shape
    hw = h * w
    hidden = c // reduction_ratio
    assert hidden >= 1, "input_channels must be >= reduction_ratio"

    x_flat = x.reshape(n, c, hw)                               # free reshape, no transpose

    w1t = jnp.asarray(params["mlp_w1"], jnp.float32).T         # (C, hidden)
    w2 = jnp.asarray(params["mlp_w2"], jnp.float32)            # (C, hidden)
    b1 = jnp.asarray(params["mlp_b1"], jnp.float32)            # (hidden,)  -> SMEM
    b2 = jnp.asarray(params["mlp_b2"], jnp.float32).reshape(c, 1)

    bytes_x = int(x.size) * x.dtype.itemsize

    # ---- Kernel A: channel-attention scale + channel-wise stats ----
    cscale, stats = pl.pallas_call(
        _make_channel_att_kernel(hidden),
        out_shape=(jax.ShapeDtypeStruct((n, c, 1), jnp.float32),
                   jax.ShapeDtypeStruct((n, 2, hw), jnp.float32)),
        grid=(n,),
        in_specs=[
            pl.BlockSpec((1, c, hw), lambda i: (i, 0, 0)),             # x, lane-dense
            pl.BlockSpec((c, hidden), lambda i: (0, 0)),               # W1^T
            pl.BlockSpec((c, hidden), lambda i: (0, 0)),               # W2
            pl.BlockSpec((c, 1), lambda i: (0, 0)),                    # b2
            pl.BlockSpec(memory_space=pltpu.MemorySpace.SMEM),         # b1 scalars
        ],
        out_specs=(pl.BlockSpec((1, c, 1), lambda i: (i, 0, 0)),
                   pl.BlockSpec((1, 2, hw), lambda i: (i, 0, 0))),
        compiler_params=pltpu.CompilerParams(dimension_semantics=("parallel",)),
        cost_estimate=pl.CostEstimate(
            flops=5 * n * c * hw + 8 * n * c * hidden,
            transcendentals=n * (c + 4 * hidden),
            bytes_accessed=bytes_x + n * (c + 2 * hw) * 4),
    )(x_flat, w1t, w2, b2, b1)

    # ---- tiny spatial-padding of the 2-channel stats map (negligible data) ----
    stats_img = stats.reshape(n, 2, h, w)
    stats_pad = jnp.pad(stats_img, ((0, 0), (0, 0), (pad, pad), (pad, pad)))

    conv_w = jnp.asarray(params["conv_w"], jnp.float32).reshape(-1)    # (2*k*k,) -> SMEM
    gamma = jnp.asarray(params["bn_gamma"], jnp.float32).reshape(())
    beta = jnp.asarray(params["bn_beta"], jnp.float32).reshape(())
    rmean = jnp.asarray(params["bn_mean"], jnp.float32).reshape(())
    rvar = jnp.asarray(params["bn_var"], jnp.float32).reshape(())
    # TODO(synk): BatchNorm2d is implemented in inference mode (running stats);
    # training-mode batch statistics are not computed in-kernel.
    bn_scale = gamma * lax.rsqrt(rvar + bn_eps)
    bn_shift = beta - rmean * bn_scale
    bn_params = jnp.stack([bn_scale, bn_shift])                        # (2,) -> SMEM

    # ---- Kernel B: 7x7 conv + BN + sigmoid -> spatial attention map ----
    smap = pl.pallas_call(
        _make_spatial_att_kernel(kernel_size),
        out_shape=jax.ShapeDtypeStruct((n, 1, h, w), jnp.float32),
        grid=(n,),
        in_specs=[
            pl.BlockSpec((1, 2, h + 2 * pad, w + 2 * pad), lambda i: (i, 0, 0, 0)),
            pl.BlockSpec(memory_space=pltpu.MemorySpace.SMEM),         # conv weights
            pl.BlockSpec(memory_space=pltpu.MemorySpace.SMEM),         # bn scale/shift
        ],
        out_specs=pl.BlockSpec((1, 1, h, w), lambda i: (i, 0, 0, 0)),
        compiler_params=pltpu.CompilerParams(dimension_semantics=("parallel",)),
        cost_estimate=pl.CostEstimate(
            flops=4 * kernel_size * kernel_size * n * hw + 3 * n * hw,
            transcendentals=n * hw,
            bytes_accessed=n * (2 * (h + 2 * pad) * (w + 2 * pad) + hw) * 4),
    )(stats_pad, conv_w, bn_params)

    # ---- Kernel C: out = x * cscale * smap (lane-dense broadcast multiply) ----
    smap_flat = smap.reshape(n, 1, hw)                                 # free reshape
    out_flat = pl.pallas_call(
        _apply_attention_kernel,
        out_shape=jax.ShapeDtypeStruct((n, c, hw), x.dtype),
        grid=(n,),
        in_specs=[
            pl.BlockSpec((1, c, hw), lambda i: (i, 0, 0)),             # x
            pl.BlockSpec((1, c, 1), lambda i: (i, 0, 0)),              # channel scale
            pl.BlockSpec((1, 1, hw), lambda i: (i, 0, 0)),             # spatial map
        ],
        out_specs=pl.BlockSpec((1, c, hw), lambda i: (i, 0, 0)),
        compiler_params=pltpu.CompilerParams(dimension_semantics=("parallel",)),
        cost_estimate=pl.CostEstimate(
            flops=2 * n * c * hw, transcendentals=0,
            bytes_accessed=2 * bytes_x + n * (c + hw) * 4),
    )(x_flat, cscale, smap_flat)

    return out_flat.reshape(n, c, h, w)


# ---------------------------------------------------------------------------
# Pure-JAX reference (same math, eval-mode BatchNorm)
# ---------------------------------------------------------------------------
def _cbam_reference(x, params, *, reduction_ratio=16, kernel_size=7, bn_eps=1e-5):
    w1, b1 = params["mlp_w1"], params["mlp_b1"]
    w2, b2 = params["mlp_w2"], params["mlp_b2"]

    avg = jnp.mean(x, axis=(2, 3))
    mx = jnp.max(x, axis=(2, 3))

    def mlp(v):
        hh = v @ w1.T + b1
        hh = hh * jax.nn.sigmoid(hh)          # SiLU
        return hh @ w2.T + b2

    logits = mlp(avg) + mlp(mx)
    xc = x * jax.nn.sigmoid(logits)[:, :, None, None]

    avg_c = jnp.mean(xc, axis=1, keepdims=True)
    max_c = jnp.max(xc, axis=1, keepdims=True)
    cat = jnp.concatenate([avg_c, max_c], axis=1)
    pad = 3 if kernel_size == 7 else 1
    conv = lax.conv_general_dilated(
        cat, params["conv_w"], window_strides=(1, 1),
        padding=[(pad, pad), (pad, pad)],
        dimension_numbers=("NCHW", "OIHW", "NCHW"))
    bn = ((conv - params["bn_mean"]) * lax.rsqrt(params["bn_var"] + bn_eps)
          * params["bn_gamma"] + params["bn_beta"])
    return xc * jax.nn.sigmoid(bn)


if __name__ == "__main__":
    key = jax.random.PRNGKey(0)
    keys = jax.random.split(key, 6)

    batch, channels, spatial = 2, 32, 16        # channels >= reduction_ratio
    reduction_ratio, ksize = 16, 7
    hidden = channels // reduction_ratio

    x = jax.random.normal(keys[0], (batch, channels, spatial, spatial),
                          dtype=jnp.float32)

    def uni(k, shape, fan_in):
        bound = 1.0 / (fan_in ** 0.5)
        return jax.random.uniform(k, shape, minval=-bound, maxval=bound,
                                  dtype=jnp.float32)

    params = {
        "mlp_w1": uni(keys[1], (hidden, channels), channels),
        "mlp_b1": uni(keys[2], (hidden,), channels),
        "mlp_w2": uni(keys[3], (channels, hidden), hidden),
        "mlp_b2": uni(keys[4], (channels,), hidden),
        "conv_w": uni(keys[5], (1, 2, ksize, ksize), 2 * ksize * ksize),
        "bn_gamma": jnp.float32(0.9),
        "bn_beta": jnp.float32(0.1),
        "bn_mean": jnp.float32(0.05),
        "bn_var": jnp.float32(1.2),
    }

    out = cbam_forward(x, params, reduction_ratio=reduction_ratio,
                       kernel_size=ksize)
    jax.block_until_ready(out)

    ref = _cbam_reference(x, params, reduction_ratio=reduction_ratio,
                          kernel_size=ksize)
    assert out.shape == x.shape
    max_err = float(jnp.max(jnp.abs(out - ref)))
    assert jnp.allclose(out, ref, atol=1e-4, rtol=1e-4), f"max abs err = {max_err}"

    print("KERNEL_OK")
</pallas_src>

<mosaic_0001>
module attributes {stable_mosaic.version = 11 : i64} {
  func.func @kernel(%arg0: i32, %arg1: memref<1x32x256xf32, #tpu.memory_space<vmem>>, %arg2: memref<32x2xf32, #tpu.memory_space<vmem>>, %arg3: memref<32x2xf32, #tpu.memory_space<vmem>>, %arg4: memref<32x1xf32, #tpu.memory_space<vmem>>, %arg5: memref<2xf32, #tpu.memory_space<smem>>, %arg6: memref<1x32x1xf32, #tpu.memory_space<vmem>>, %arg7: memref<1x2x256xf32, #tpu.memory_space<vmem>>) attributes {dimension_semantics = [#tpu.dimension_semantics<parallel>], iteration_bounds = array<i64: 2>, scalar_prefetch = 0 : i64, scratch_operands = 0 : i64, tpu.core_type = #tpu.core_type<tc>, window_params = [{transform_indices = @transform_0, window_bounds = array<i64: 1, 32, 256>}, {pipeline_mode = #tpu.pipeline_mode<synchronous>, transform_indices = @transform_1, window_bounds = array<i64: 32, 2>}, {pipeline_mode = #tpu.pipeline_mode<synchronous>, transform_indices = @transform_2, window_bounds = array<i64: 32, 2>}, {pipeline_mode = #tpu.pipeline_mode<synchronous>, transform_indices = @transform_3, window_bounds = array<i64: 32, 1>}, {transform_indices = @transform_4, window_bounds = array<i64: 2>}, {transform_indices = @transform_5, window_bounds = array<i64: 1, 32, 1>}, {transform_indices = @transform_6, window_bounds = array<i64: 1, 2, 256>}]} {
    %c0 = arith.constant 0 : index
    %c0_0 = arith.constant 0 : index
    %c0_1 = arith.constant 0 : index
    %0 = vector.load %arg1[%c0, %c0_0, %c0_1] : memref<1x32x256xf32, #tpu.memory_space<vmem>>, vector<1x32x256xf32>
    %1 = vector.shape_cast %0 : vector<1x32x256xf32> to vector<32x256xf32>
    %cst = arith.constant dense<0.000000e+00> : vector<32xf32>
    %2 = vector.multi_reduction <add>, %1, %cst [1] : vector<32x256xf32> to vector<32xf32>
    %3 = vector.shape_cast %2 : vector<32xf32> to vector<32x1xf32>
    %cst_2 = arith.constant 3.906250e-03 : f32
    %4 = vector.broadcast %cst_2 : f32 to vector<32x1xf32>
    %5 = arith.mulf %3, %4 : vector<32x1xf32>
    %cst_3 = arith.constant dense<0xFF800000> : vector<32xf32>
    %6 = vector.multi_reduction <maximumf>, %1, %cst_3 [1] : vector<32x256xf32> to vector<32xf32>
    %7 = vector.shape_cast %6 : vector<32xf32> to vector<32x1xf32>
    %c0_4 = arith.constant 0 : index
    %c0_5 = arith.constant 0 : index
    %8 = vector.load %arg2[%c0_4, %c0_5] : memref<32x2xf32, #tpu.memory_space<vmem>>, vector<32x2xf32>
    %c0_6 = arith.constant 0 : index
    %c0_7 = arith.constant 0 : index
    %9 = vector.load %arg3[%c0_6, %c0_7] : memref<32x2xf32, #tpu.memory_space<vmem>>, vector<32x2xf32>
    %c0_8 = arith.constant 0 : index
    %c0_9 = arith.constant 0 : index
    %10 = vector.load %arg4[%c0_8, %c0_9] : memref<32x1xf32, #tpu.memory_space<vmem>>, vector<32x1xf32>
    %11 = vector.extract_strided_slice %8 {offsets = [0, 0], sizes = [32, 1], strides = [1, 1]} : vector<32x2xf32> to vector<32x1xf32>
    %12 = arith.mulf %11, %5 : vector<32x1xf32>
    %cst_10 = arith.constant dense<0.000000e+00> : vector<1xf32>
    %13 = vector.multi_reduction <add>, %12, %cst_10 [0] : vector<32x1xf32> to vector<1xf32>
    %14 = vector.shape_cast %13 : vector<1xf32> to vector<1x1xf32>
    %c0_11 = arith.constant 0 : index
    %15 = memref.load %arg5[%c0_11] : memref<2xf32, #tpu.memory_space<smem>>
    %16 = vector.broadcast %15 : f32 to vector<1x1xf32>
    %17 = arith.addf %14, %16 : vector<1x1xf32>
    %18 = arith.negf %17 : vector<1x1xf32>
    %19 = math.exp %18 : vector<1x1xf32>
    %cst_12 = arith.constant 1.000000e+00 : f32
    %20 = vector.broadcast %cst_12 : f32 to vector<1x1xf32>
    %21 = arith.addf %20, %19 : vector<1x1xf32>
    %22 = arith.divf %20, %21 : vector<1x1xf32>
    %23 = arith.mulf %17, %22 : vector<1x1xf32>
    %24 = vector.extract_strided_slice %9 {offsets = [0, 0], sizes = [32, 1], strides = [1, 1]} : vector<32x2xf32> to vector<32x1xf32>
    %25 = vector.broadcast %23 : vector<1x1xf32> to vector<32x1xf32>
    %26 = arith.mulf %24, %25 : vector<32x1xf32>
    %27 = arith.addf %10, %26 : vector<32x1xf32>
    %28 = vector.extract_strided_slice %8 {offsets = [0, 1], sizes = [32, 1], strides = [1, 1]} : vector<32x2xf32> to vector<32x1xf32>
    %29 = arith.mulf %28, %5 : vector<32x1xf32>
    %cst_13 = arith.constant dense<0.000000e+00> : vector<1xf32>
    %30 = vector.multi_reduction <add>, %29, %cst_13 [0] : vector<32x1xf32> to vector<1xf32>
    %31 = vector.shape_cast %30 : vector<1xf32> to vector<1x1xf32>
    %c1 = arith.constant 1 : index
    %32 = memref.load %arg5[%c1] : memref<2xf32, #tpu.memory_space<smem>>
    %33 = vector.broadcast %32 : f32 to vector<1x1xf32>
    %34 = arith.addf %31, %33 : vector<1x1xf32>
    %35 = arith.negf %34 : vector<1x1xf32>
    %36 = math.exp %35 : vector<1x1xf32>
    %cst_14 = arith.constant 1.000000e+00 : f32
    %37 = vector.broadcast %cst_14 : f32 to vector<1x1xf32>
    %38 = arith.addf %37, %36 : vector<1x1xf32>
    %39 = arith.divf %37, %38 : vector<1x1xf32>
    %40 = arith.mulf %34, %39 : vector<1x1xf32>
    %41 = vector.extract_strided_slice %9 {offsets = [0, 1], sizes = [32, 1], strides = [1, 1]} : vector<32x2xf32> to vector<32x1xf32>
    %42 = vector.broadcast %40 : vector<1x1xf32> to vector<32x1xf32>
    %43 = arith.mulf %41, %42 : vector<32x1xf32>
    %44 = arith.addf %27, %43 : vector<32x1xf32>
    %45 = vector.extract_strided_slice %8 {offsets = [0, 0], sizes = [32, 1], strides = [1, 1]} : vector<32x2xf32> to vector<32x1xf32>
    %46 = arith.mulf %45, %7 : vector<32x1xf32>
    %cst_15 = arith.constant dense<0.000000e+00> : vector<1xf32>
    %47 = vector.multi_reduction <add>, %46, %cst_15 [0] : vector<32x1xf32> to vector<1xf32>
    %48 = vector.shape_cast %47 : vector<1xf32> to vector<1x1xf32>
    %c0_16 = arith.constant 0 : index
    %49 = memref.load %arg5[%c0_16] : memref<2xf32, #tpu.memory_space<smem>>
    %50 = vector.broadcast %49 : f32 to vector<1x1xf32>
    %51 = arith.addf %48, %50 : vector<1x1xf32>
    %52 = arith.negf %51 : vector<1x1xf32>
    %53 = math.exp %52 : vector<1x1xf32>
    %cst_17 = arith.constant 1.000000e+00 : f32
    %54 = vector.broadcast %cst_17 : f32 to vector<1x1xf32>
    %55 = arith.addf %54, %53 : vector<1x1xf32>
    %56 = arith.divf %54, %55 : vector<1x1xf32>
    %57 = arith.mulf %51, %56 : vector<1x1xf32>
    %58 = vector.extract_strided_slice %9 {offsets = [0, 0], sizes = [32, 1], strides = [1, 1]} : vector<32x2xf32> to vector<32x1xf32>
    %59 = vector.broadcast %57 : vector<1x1xf32> to vector<32x1xf32>
    %60 = arith.mulf %58, %59 : vector<32x1xf32>
    %61 = arith.addf %10, %60 : vector<32x1xf32>
    %62 = vector.extract_strided_slice %8 {offsets = [0, 1], sizes = [32, 1], strides = [1, 1]} : vector<32x2xf32> to vector<32x1xf32>
    %63 = arith.mulf %62, %7 : vector<32x1xf32>
    %cst_18 = arith.constant dense<0.000000e+00> : vector<1xf32>
    %64 = vector.multi_reduction <add>, %63, %cst_18 [0] : vector<32x1xf32> to vector<1xf32>
    %65 = vector.shape_cast %64 : vector<1xf32> to vector<1x1xf32>
    %c1_19 = arith.constant 1 : index
    %66 = memref.load %arg5[%c1_19] : memref<2xf32, #tpu.memory_space<smem>>
    %67 = vector.broadcast %66 : f32 to vector<1x1xf32>
    %68 = arith.addf %65, %67 : vector<1x1xf32>
    %69 = arith.negf %68 : vector<1x1xf32>
    %70 = math.exp %69 : vector<1x1xf32>
    %cst_20 = arith.constant 1.000000e+00 : f32
    %71 = vector.broadcast %cst_20 : f32 to vector<1x1xf32>
    %72 = arith.addf %71, %70 : vector<1x1xf32>
    %73 = arith.divf %71, %72 : vector<1x1xf32>
    %74 = arith.mulf %68, %73 : vector<1x1xf32>
    %75 = vector.extract_strided_slice %9 {offsets = [0, 1], sizes = [32, 1], strides = [1, 1]} : vector<32x2xf32> to vector<32x1xf32>
    %76 = vector.broadcast %74 : vector<1x1xf32> to vector<32x1xf32>
    %77 = arith.mulf %75, %76 : vector<32x1xf32>
    %78 = arith.addf %61, %77 : vector<32x1xf32>
    %79 = arith.addf %44, %78 : vector<32x1xf32>
    %80 = arith.negf %79 : vector<32x1xf32>
    %81 = math.exp %80 : vector<32x1xf32>
    %cst_21 = arith.constant 1.000000e+00 : f32
    %82 = vector.broadcast %cst_21 : f32 to vector<32x1xf32>
    %83 = arith.addf %82, %81 : vector<32x1xf32>
    %84 = arith.divf %82, %83 : vector<32x1xf32>
    %c0_22 = arith.constant 0 : index
    %c0_23 = arith.constant 0 : index
    %c0_24 = arith.constant 0 : index
    %85 = vector.load %arg6[%c0_22, %c0_23, %c0_24] : memref<1x32x1xf32, #tpu.memory_space<vmem>>, vector<1x32x1xf32>
    %86 = vector.shape_cast %85 : vector<1x32x1xf32> to vector<32x1xf32>
    %87 = vector.shape_cast %84 : vector<32x1xf32> to vector<1x32x1xf32>
    tpu.vector_store %arg6[%c0_22, %c0_23, %c0_24], %87 {strides = array<i32>} : memref<1x32x1xf32, #tpu.memory_space<vmem>>, vector<1x32x1xf32>,
    %88 = vector.broadcast %84 : vector<32x1xf32> to vector<32x256xf32>
    %89 = arith.mulf %1, %88 : vector<32x256xf32>
    %cst_25 = arith.constant dense<0.000000e+00> : vector<256xf32>
    %90 = vector.multi_reduction <add>, %89, %cst_25 [0] : vector<32x256xf32> to vector<256xf32>
    %91 = vector.shape_cast %90 : vector<256xf32> to vector<1x256xf32>
    %cst_26 = arith.constant 3.125000e-02 : f32
    %92 = vector.broadcast %cst_26 : f32 to vector<1x256xf32>
    %93 = arith.mulf %91, %92 : vector<1x256xf32>
    %c0_27 = arith.constant 0 : index
    %c0_28 = arith.constant 0 : index
    %c0_29 = arith.constant 0 : index
    %94 = vector.load %arg7[%c0_27, %c0_28, %c0_29] : memref<1x2x256xf32, #tpu.memory_space<vmem>>, vector<1x1x256xf32>
    %95 = vector.shape_cast %94 : vector<1x1x256xf32> to vector<1x256xf32>
    %96 = vector.shape_cast %93 : vector<1x256xf32> to vector<1x1x256xf32>
    tpu.vector_store %arg7[%c0_27, %c0_28, %c0_29], %96 {strides = array<i32>} : memref<1x2x256xf32, #tpu.memory_space<vmem>>, vector<1x1x256xf32>,
    %cst_30 = arith.constant dense<0xFF800000> : vector<256xf32>
    %97 = vector.multi_reduction <maximumf>, %89, %cst_30 [0] : vector<32x256xf32> to vector<256xf32>
    %98 = vector.shape_cast %97 : vector<256xf32> to vector<1x256xf32>
    %c0_31 = arith.constant 0 : index
    %c1_32 = arith.constant 1 : index
    %c0_33 = arith.constant 0 : index
    %99 = vector.load %arg7[%c0_31, %c1_32, %c0_33] : memref<1x2x256xf32, #tpu.memory_space<vmem>>, vector<1x1x256xf32>
    %100 = vector.shape_cast %99 : vector<1x1x256xf32> to vector<1x256xf32>
    %101 = vector.shape_cast %98 : vector<1x256xf32> to vector<1x1x256xf32>
    tpu.vector_store %arg7[%c0_31, %c1_32, %c0_33], %101 {strides = array<i32>} : memref<1x2x256xf32, #tpu.memory_space<vmem>>, vector<1x1x256xf32>,
    return
  }
  func.func @transform_0(%arg0: i32) -> (i32, i32, i32) {
    %c0_i32 = arith.constant 0 : i32
    %c0_i32_0 = arith.constant 0 : i32
    %c0_i32_1 = arith.constant 0 : i32
    return %arg0, %c0_i32, %c0_i32_0 : i32, i32, i32
  }
  func.func @transform_1(%arg0: i32) -> (i32, i32) {
    %c0_i32 = arith.constant 0 : i32
    %c0_i32_0 = arith.constant 0 : i32
    %c0_i32_1 = arith.constant 0 : i32
    return %c0_i32, %c0_i32_0 : i32, i32
  }
  func.func @transform_2(%arg0: i32) -> (i32, i32) {
    %c0_i32 = arith.constant 0 : i32
    %c0_i32_0 = arith.constant 0 : i32
    %c0_i32_1 = arith.constant 0 : i32
    return %c0_i32, %c0_i32_0 : i32, i32
  }
  func.func @transform_3(%arg0: i32) -> (i32, i32) {
    %c0_i32 = arith.constant 0 : i32
    %c0_i32_0 = arith.constant 0 : i32
    %c0_i32_1 = arith.constant 0 : i32
    return %c0_i32, %c0_i32_0 : i32, i32
  }
  func.func @transform_4(%arg0: i32) -> i32 {
    %c0_i32 = arith.constant 0 : i32
    %c0_i32_0 = arith.constant 0 : i32
    return %c0_i32 : i32
  }
  func.func @transform_5(%arg0: i32) -> (i32, i32, i32) {
    %c0_i32 = arith.constant 0 : i32
    %c0_i32_0 = arith.constant 0 : i32
    %c0_i32_1 = arith.constant 0 : i32
    return %arg0, %c0_i32, %c0_i32_0 : i32, i32, i32
  }
  func.func @transform_6(%arg0: i32) -> (i32, i32, i32) {
    %c0_i32 = arith.constant 0 : i32
    %c0_i32_0 = arith.constant 0 : i32
    %c0_i32_1 = arith.constant 0 : i32
    return %arg0, %c0_i32, %c0_i32_0 : i32, i32, i32
  }
}

</mosaic_0001>

<llo_original>
// kernel: tpu_custom_call.1
$region0: #{tpu_custom_call.1}
  #allocation0 [shape = 'u32[]', space=smem, size = 0x4, offset = 0x4, fixed_abs, tag = 'smem constant byte address 0x4 - core index']
  #allocation1 [shape = 'u32[72,128]{1,0:T(1,128)}', space=vmem, size = 0x9000, scoped, tag = 'internal scratch']
  %s0 = inlined_call_operand.hbm [shape: f32[2,32,256], index: 0, kind: input, shape index: {}]
  %s1 = inlined_call_operand.vmem [shape: f32[32,2], index: 1, kind: input, shape index: {}]
  %s2 = inlined_call_operand.vmem [shape: f32[32,2], index: 2, kind: input, shape index: {}]
  %s3 = inlined_call_operand.vmem [shape: f32[32,1], index: 3, kind: input, shape index: {}]
  %s4 = inlined_call_operand.vmem [shape: f32[2], index: 4, kind: input, shape index: {}]
  %s5 = inlined_call_operand.vmem [shape: f32[2,32,1], index: 5, kind: output, shape index: {0}]
  %s6 = inlined_call_operand.hbm [shape: f32[2,2,256], index: 6, kind: output, shape index: {1}]
  %7 = xla_tuple %s5, %s6
  %s8 = sld [smem:[#allocation0]]
  $region69: #{tpu_custom_call.1} parent=0
    _
  %s10 = ssub.s32 1, %s8
  %s11 = scalar_select 0, %s10, %s8
  $region1: #{tpu_custom_call.1} parent=0
    #allocation2 [shape = 'u8[65536]{0}', space=vmem, size = 0x10000, scoped, tag = 'input window, operand 0']
    #allocation3 [shape = 's32[2]{0}', space=sflag, size = 0x8, scoped, tag = 'scoped memory for tpu_custom_call.1']
    #allocation4 [shape = 's32[2]{0}', space=sflag, size = 0x8, scoped, tag = 'scoped memory for tpu_custom_call.1']
    #allocation5 [shape = 's32[2]{0}', space=sflag, size = 0x8, scoped, tag = 'scoped memory for tpu_custom_call.1']
    #allocation6 [shape = 'u8[512]{0}', space=smem, size = 0x200, scoped, tag = 'input window, operand 4, single buffered']
    #allocation7 [shape = 'u8[4096]{0}', space=vmem, size = 0x1000, scoped, tag = 'output window, operand 1']
    %12 = vsyncpa [#allocation3], 0
    %s13 = scalar_lea.sflag [#allocation3], 1
    %14 = vsyncpa %s13, 0
    %15 = vsyncpa [#allocation5], 0
    %16 = vsyncpa [#allocation4], 0
    %s17 = scalar_lea.sflag [#allocation4], 1
    %18 = vsyncpa %s17, 0
    loop: start=0, step=1, limit=4
    $region2: #{tpu_custom_call.1} parent=1 // loop_pre_header
      _
    $region3: #{tpu_custom_call.1} parent=1 // loop_header
      %s20 = sphi 0, %s24
      %p21 = scmp.ge.s32.totalorder %s20, 4
      %s30 = sphi 0, %s32
      %s33 = sphi 0, %s30
      %s34 = sphi 0, %s33
      %s50 = sphi 0, %s34
      %s54 = sphi 0, %s54
      %s56 = sphi 0, %s54
      %s57 = sphi 0, %s56
      %s71 = sphi 0, %s57
      %s75 = sphi 0, %s75
      %s77 = sphi 0, %s75
      %s78 = sphi 0, %s77
      %s92 = sphi 0, %s78
      %s96 = sphi 0, %s96
      %s98 = sphi 0, %s96
      %s99 = sphi 0, %s98
      %s113 = sphi 0, %s99
      %s117 = sphi 0, %s117
      %s119 = sphi 0, %s117
      %s120 = sphi 0, %s119
      %s134 = sphi 0, %s120
      %s140 = sphi 0, %s142
      %s143 = sphi 0, %s140
      %s144 = sphi 0, %s143
      %s160 = sphi 0, %s144
      %s166 = sphi 0, %s168
      %s169 = sphi 0, %s166
      %s170 = sphi 0, %s169
      %s186 = sphi 0, %s170
    $region4: #{tpu_custom_call.1} parent=1 // loop_header_branch
      %23 = sbr.rel (%p21) target = $region8
    $region5: #{tpu_custom_call.1} parent=1 // loop_body
      %s25 = ssub.s32 %s20, 1
      %s26 = ssub.s32 %s20, 2
      %s27 = sadd.s32 %s20, 1
      %s28 = ssub.s32 %s20, %s27
      %p29 = scmp.eq.s32.totalorder %s28, 0
      %s31 = sadd.s32 %s30, 1
      %s32 = scalar_select %p29, %s30, %s31
      %p35 = pneg %p29
      %p36 = scmp.eq.s32.totalorder %s20, 1
      %p37 = por %p35, %p36
      %p38 = scmp.ne.s32.totalorder %s30, %s33
      %p39 = scmp.eq.s32.totalorder %s20, 0
      %p40 = por %p38, %p39
      %p41 = scmp.ne.s32.totalorder %s30, %s33
      %p42 = scmp.eq.s32.totalorder %s25, 1
      %p43 = por %p41, %p42
      %p44 = scmp.ne.s32.totalorder %s33, %s34
      %p45 = scmp.eq.s32.totalorder %s25, 0
      %p46 = por %p44, %p45
      %p47 = scmp.ne.s32.totalorder %s33, %s34
      %p48 = scmp.eq.s32.totalorder %s26, 1
      %p49 = por %p47, %p48
      %p51 = scmp.ne.s32.totalorder %s34, %s50
      %p52 = scmp.eq.s32.totalorder %s26, 0
      %p53 = por %p51, %p52
      %s55 = sadd.s32 %s54, 1
      %p58 = scmp.eq.s32.totalorder %s20, 1
      %p59 = scmp.ne.s32.totalorder %s54, %s56
      %p60 = scmp.eq.s32.totalorder %s20, 0
      %p61 = por %p59, %p60
      %p62 = scmp.ne.s32.totalorder %s54, %s56
      %p63 = scmp.eq.s32.totalorder %s25, 1
      %p64 = por %p62, %p63
      %p65 = scmp.ne.s32.totalorder %s56, %s57
      %p66 = scmp.eq.s32.totalorder %s25, 0
      %p67 = por %p65, %p66
      %p68 = scmp.ne.s32.totalorder %s56, %s57
      %p69 = scmp.eq.s32.totalorder %s26, 1
      %p70 = por %p68, %p69
      %p72 = scmp.ne.s32.totalorder %s57, %s71
      %p73 = scmp.eq.s32.totalorder %s26, 0
      %p74 = por %p72, %p73
      %s76 = sadd.s32 %s75, 1
      %p79 = scmp.eq.s32.totalorder %s20, 1
      %p80 = scmp.ne.s32.totalorder %s75, %s77
      %p81 = scmp.eq.s32.totalorder %s20, 0
      %p82 = por %p80, %p81
      %p83 = scmp.ne.s32.totalorder %s75, %s77
      %p84 = scmp.eq.s32.totalorder %s25, 1
      %p85 = por %p83, %p84
      %p86 = scmp.ne.s32.totalorder %s77, %s78
      %p87 = scmp.eq.s32.totalorder %s25, 0
      %p88 = por %p86, %p87
      %p89 = scmp.ne.s32.totalorder %s77, %s78
      %p90 = scmp.eq.s32.totalorder %s26, 1
      %p91 = por %p89, %p90
      %p93 = scmp.ne.s32.totalorder %s78, %s92
      %p94 = scmp.eq.s32.totalorder %s26, 0
      %p95 = por %p93, %p94
      %s97 = sadd.s32 %s96, 1
      %p100 = scmp.eq.s32.totalorder %s20, 1
      %p101 = scmp.ne.s32.totalorder %s96, %s98
      %p102 = scmp.eq.s32.totalorder %s20, 0
      %p103 = por %p101, %p102
      %p104 = scmp.ne.s32.totalorder %s96, %s98
      %p105 = scmp.eq.s32.totalorder %s25, 1
      %p106 = por %p104, %p105
      %p107 = scmp.ne.s32.totalorder %s98, %s99
      %p108 = scmp.eq.s32.totalorder %s25, 0
      %p109 = por %p107, %p108
      %p110 = scmp.ne.s32.totalorder %s98, %s99
      %p111 = scmp.eq.s32.totalorder %s26, 1
      %p112 = por %p110, %p111
      %p114 = scmp.ne.s32.totalorder %s99, %s113
      %p115 = scmp.eq.s32.totalorder %s26, 0
      %p116 = por %p114, %p115
      %s118 = sadd.s32 %s117, 1
      %p121 = scmp.eq.s32.totalorder %s20, 1
      %p122 = scmp.ne.s32.totalorder %s117, %s119
      %p123 = scmp.eq.s32.totalorder %s20, 0
      %p124 = por %p122, %p123
      %p125 = scmp.ne.s32.totalorder %s117, %s119
      %p126 = scmp.eq.s32.totalorder %s25, 1
      %p127 = por %p125, %p126
      %p128 = scmp.ne.s32.totalorder %s119, %s120
      %p129 = scmp.eq.s32.totalorder %s25, 0
      %p130 = por %p128, %p129
      %p131 = scmp.ne.s32.totalorder %s119, %s120
      %p132 = scmp.eq.s32.totalorder %s26, 1
      %p133 = por %p131, %p132
      %p135 = scmp.ne.s32.totalorder %s120, %s134
      %p136 = scmp.eq.s32.totalorder %s26, 0
      %p137 = por %p135, %p136
      %s138 = ssub.s32 %s20, %s27
      %p139 = scmp.eq.s32.totalorder %s138, 0
      %s141 = sadd.s32 %s140, 1
      %s142 = scalar_select %p139, %s140, %s141
      %p145 = pneg %p139
      %p146 = scmp.eq.s32.totalorder %s20, 1
      %p147 = por %p145, %p146
      %p148 = scmp.ne.s32.totalorder %s140, %s143
      %p149 = scmp.eq.s32.totalorder %s20, 0
      %p150 = por %p148, %p149
      %p151 = scmp.ne.s32.totalorder %s140, %s143
      %p152 = scmp.eq.s32.totalorder %s25, 1
      %p153 = por %p151, %p152
      %p154 = scmp.ne.s32.totalorder %s143, %s144
      %p155 = scmp.eq.s32.totalorder %s25, 0
      %p156 = por %p154, %p155
      %p157 = scmp.ne.s32.totalorder %s143, %s144
      %p158 = scmp.eq.s32.totalorder %s26, 1
      %p159 = por %p157, %p158
      %p161 = scmp.ne.s32.totalorder %s144, %s160
      %p162 = scmp.eq.s32.totalorder %s26, 0
      %p163 = por %p161, %p162
      %s164 = ssub.s32 %s20, %s27
      %p165 = scmp.eq.s32.totalorder %s164, 0
      %s167 = sadd.s32 %s166, 1
      %s168 = scalar_select %p165, %s166, %s167
      %p171 = pneg %p165
      %p172 = scmp.eq.s32.totalorder %s20, 1
      %p173 = por %p171, %p172
      %p174 = scmp.ne.s32.totalorder %s166, %s169
      %p175 = scmp.eq.s32.totalorder %s20, 0
      %p176 = por %p174, %p175
      %p177 = scmp.ne.s32.totalorder %s166, %s169
      %p178 = scmp.eq.s32.totalorder %s25, 1
      %p179 = por %p177, %p178
      %p180 = scmp.ne.s32.totalorder %s169, %s170
      %p181 = scmp.eq.s32.totalorder %s25, 0
      %p182 = por %p180, %p181
      %p183 = scmp.ne.s32.totalorder %s169, %s170
      %p184 = scmp.eq.s32.totalorder %s26, 1
      %p185 = por %p183, %p184
      %p187 = scmp.ne.s32.totalorder %s170, %s186
      %p188 = scmp.eq.s32.totalorder %s26, 0
      %p189 = por %p187, %p188
      %p190 = scmp.le.s32.totalorder 1, %s20
      %p191 = scmp.lt.s32.totalorder %s20, 3
      %p192 = pnand %p190, %p191
      %p193 = pneg %p192
      // Predicated region
      $region9: #{tpu_custom_call.1} parent=5 // pred_check
        _
      $region10: #{tpu_custom_call.1} parent=5 // pred_check_branch
        %195 = sbr.rel (%p192) target = $region12
      $region11: #{tpu_custom_call.1} parent=5 // pred_region
        %s196 = ssub.s32 %s20, 1
        // Predicated region
        $region13: #{tpu_custom_call.1} parent=11 // pred_check
          %p197 = pneg %p67
        $region14: #{tpu_custom_call.1} parent=11 // pred_check_branch
          %199 = sbr.rel (%p197) target = $region16
        $region15: #{tpu_custom_call.1} parent=11 // pred_region
          _
        $region16: #{tpu_custom_call.1} parent=11 // pred_fallthru
          _
        // Predicated region
        $region17: #{tpu_custom_call.1} parent=11 // pred_check
          %p200 = pneg %p88
        $region18: #{tpu_custom_call.1} parent=11 // pred_check_branch
          %202 = sbr.rel (%p200) target = $region20
        $region19: #{tpu_custom_call.1} parent=11 // pred_region
          _
        $region20: #{tpu_custom_call.1} parent=11 // pred_fallthru
          _
        // Predicated region
        $region21: #{tpu_custom_call.1} parent=11 // pred_check
          %p203 = pneg %p109
        $region22: #{tpu_custom_call.1} parent=11 // pred_check_branch
          %205 = sbr.rel (%p203) target = $region24
        $region23: #{tpu_custom_call.1} parent=11 // pred_region
          _
        $region24: #{tpu_custom_call.1} parent=11 // pred_fallthru
          _
        // Predicated region
        $region25: #{tpu_custom_call.1} parent=11 // pred_check
          %p206 = pneg %p130
        $region26: #{tpu_custom_call.1} parent=11 // pred_check_branch
          %208 = sbr.rel (%p206) target = $region28
        $region27: #{tpu_custom_call.1} parent=11 // pred_region
          %210 = vsyncadd [#allocation5], 0
          %s212 = sshll.u32 %s4, 4
          %s213 = int_to_ptr.vmem [resolvable:$true] %s212
          %215 = dma.vmem_to_smem %s213, 16, [#allocation6], [#allocation5]
        $region28: #{tpu_custom_call.1} parent=11 // pred_fallthru
          _
      $region12: #{tpu_custom_call.1} parent=5 // pred_fallthru
        _
      %p216 = scmp.lt.s32.totalorder %s20, 2
      // Predicated region
      $region29: #{tpu_custom_call.1} parent=5 // pred_check
        %p217 = pneg %p216
      $region30: #{tpu_custom_call.1} parent=5 // pred_check_branch
        %219 = sbr.rel (%p217) target = $region32
      $region31: #{tpu_custom_call.1} parent=5 // pred_region
        // Predicated region
        $region33: #{tpu_custom_call.1} parent=31 // pred_check
          %p220 = pneg %p40
        $region34: #{tpu_custom_call.1} parent=31 // pred_check_branch
          %222 = sbr.rel (%p220) target = $region36
        $region35: #{tpu_custom_call.1} parent=31 // pred_region
          %s223 = sand.u32 %s30, 1
          %s224 = scalar_lea.sflag [#allocation3], %s223
          %s225 = sand.u32 %s30, 1
          %s226 = smul.addr %s225, 64
          %s227 = scalar_lea.vmem [#allocation2], %s226
          %229 = vsyncadd %s224, 0
          %s230 = smul.addr %s20, 8
          %s231 = smul.addr %s230, 8
          %s232 = scalar_lea.hbm %s0, %s231
          %s233 = sshll.u32 %s232, 4
          %s234 = int_to_ptr.hbm [resolvable:$true] %s233
          %s235 = sshll.u32 %s227, 4
          %s236 = int_to_ptr.vmem [resolvable:$true] %s235
          %241 = dma.hbm_to_vmem [thread:$0]  %s234, 1024, %s236, %s224, 256, 256, 16
        $region36: #{tpu_custom_call.1} parent=31 // pred_fallthru
          _
      $region32: #{tpu_custom_call.1} parent=5 // pred_fallthru
        _
      %p242 = scmp.le.s32.totalorder 1, %s20
      %p243 = scmp.lt.s32.totalorder %s20, 3
      %p244 = pnand %p242, %p243
      %p245 = pneg %p244
      // Predicated region
      $region37: #{tpu_custom_call.1} parent=5 // pred_check
        _
      $region38: #{tpu_custom_call.1} parent=5 // pred_check_branch
        %247 = sbr.rel (%p244) target = $region40
      $region39: #{tpu_custom_call.1} parent=5 // pred_region
        %s248 = ssub.s32 %s20, 1
        %s249 = sand.u32 %s33, 1
        %s250 = scalar_lea.sflag [#allocation3], %s249
        %s251 = sand.u32 %s33, 1
        %s252 = smul.addr %s251, 64
        %s253 = scalar_lea.vmem [#allocation2], %s252
        // Predicated region
        $region41: #{tpu_custom_call.1} parent=39 // pred_check
          %p254 = pneg %p46
        $region42: #{tpu_custom_call.1} parent=39 // pred_check_branch
          %256 = sbr.rel (%p254) target = $region44
        $region43: #{tpu_custom_call.1} parent=39 // pred_region
          %258 = dma.done %s250, 1024
        $region44: #{tpu_custom_call.1} parent=39 // pred_fallthru
          _
        // Predicated region
        $region45: #{tpu_custom_call.1} parent=39 // pred_check
          %p259 = pneg %p130
        $region46: #{tpu_custom_call.1} parent=39 // pred_check_branch
          %261 = sbr.rel (%p259) target = $region48
        $region47: #{tpu_custom_call.1} parent=39 // pred_region
          %263 = dma.done [#allocation5], 16
        $region48: #{tpu_custom_call.1} parent=39 // pred_fallthru
          _
        %264 = sfence
        %s265 = sand.u32 %s33, 1
        %s266 = scalar_lea.sflag [#allocation3], %s265
        %s267 = sand.u32 %s33, 1
        %s268 = smul.addr %s267, 64
        %s269 = scalar_lea.vmem [#allocation2], %s268
        %p270 = pneg %p46
        %p271 = pneg %p43
        %p272 = pneg %p67
        %p273 = pneg %p64
        %p274 = pneg %p88
        %p275 = pneg %p85
        %p276 = pneg %p109
        %p277 = pneg %p106
        %p278 = pneg %p130
        %p279 = pneg %p127
        %p280 = pneg %p156
        %p281 = pneg %p153
        %p282 = scmp.lt.s32.totalorder %s25, 1
        %s283 = scalar_select %p282, %s25, 1
        %s284 = smul.addr %s283, 4
        %s285 = smul.addr %s284, 8
        %s286 = scalar_lea.vmem %s5, %s285
        %p287 = pneg %p182
        %p288 = pneg %p179
        %s289 = sand.u32 %s169, 1
        %s290 = scalar_lea.sflag [#allocation4], %s289
        %s291 = sand.u32 %s169, 1
        %s292 = smul.addr %s291, 4
        %s293 = scalar_lea.vmem [#allocation7], %s292
        %p294 = scmp.lt.s32.totalorder %s25, 1
        %s295 = scalar_select %p294, %s25, 1
        %s296 = smul.addr %s295, 4
        %s297 = smul.addr %s296, 8
        %s298 = scalar_lea.vmem %s5, %s297
        %v299 = vld [vmem:[%s253] sm:$0xff]
        %v300 = vld [vmem:[%s253 + $0x8] sm:$0xff]
        %v301 = vld [vmem:[%s253 + $0x10] sm:$0xff]
        %v302 = vld [vmem:[%s253 + $0x18] sm:$0xff]
        %v303 = vld [vmem:[%s253 + $0x20] sm:$0xff]
        %v304 = vld [vmem:[%s253 + $0x28] sm:$0xff]
        %v305 = vld [vmem:[%s253 + $0x30] sm:$0xff]
        %v306 = vld [vmem:[%s253 + $0x38] sm:$0xff]
        %v307 = vadd.f32 %v299, %v300
        %308 = vadd.xlane.f32.xlu0 %v307
        %v309 = vpop.xlane.xlu0 %308
        %v310 = vadd.f32 %v301, %v302
        %311 = vadd.xlane.f32.xlu0 %v310
        %v312 = vpop.xlane.xlu0 %311
        %v313 = vadd.f32 %v303, %v304
        %314 = vadd.xlane.f32.xlu0 %v313
        %v315 = vpop.xlane.xlu0 %314
        %v316 = vadd.f32 %v305, %v306
        %317 = vadd.xlane.f32.xlu0 %v316
        %v318 = vpop.xlane.xlu0 %317
        %v319 = vmul.f32 %v309, 0.00390625
        %v320 = vmul.f32 %v312, 0.00390625
        %v321 = vmul.f32 %v315, 0.00390625
        %v322 = vmul.f32 %v318, 0.00390625
        %v323 = vmax.f32 %v299, %v300
        %324 = vmax.xlane.f32.xlu0 %v323
        %v325 = vpop.xlane.xlu0 %324
        %v326 = vmax.f32 %v301, %v302
        %327 = vmax.xlane.f32.xlu0 %v326
        %v328 = vpop.xlane.xlu0 %327
        %v329 = vmax.f32 %v303, %v304
        %330 = vmax.xlane.f32.xlu0 %v329
        %v331 = vpop.xlane.xlu0 %330
        %v332 = vmax.f32 %v305, %v306
        %333 = vmax.xlane.f32.xlu0 %v332
        %v334 = vpop.xlane.xlu0 %333
        %v335 = vld [vmem:[%s1] sm:$0xff]
        %v336 = vld [vmem:[%s1 + $0x8] sm:$0xff]
        %v337 = vld [vmem:[%s1 + $0x10] sm:$0xff]
        %v338 = vld [vmem:[%s1 + $0x18] sm:$0xff]
        %v339 = vld [vmem:[%s2] sm:$0xff]
        %v340 = vld [vmem:[%s2 + $0x8] sm:$0xff]
        %v341 = vld [vmem:[%s2 + $0x10] sm:$0xff]
        %v342 = vld [vmem:[%s2 + $0x18] sm:$0xff]
        %v343 = vld [vmem:[%s3] sm:$0xff]
        %v344 = vld [vmem:[%s3 + $0x8] sm:$0xff]
        %v345 = vld [vmem:[%s3 + $0x10] sm:$0xff]
        %v346 = vld [vmem:[%s3 + $0x18] sm:$0xff]
        %v347 = vmul.f32 %v335, %v319
        %v348 = vmul.f32 %v336, %v320
        %v349 = vmul.f32 %v337, %v321
        %v350 = vmul.f32 %v338, %v322
        %vm351 = vcmask 7168
        %v352 = vsel %vm351, %v347, 0.0
        %v353 = vsel %vm351, %v348, 0.0
        %v354 = vadd.f32 %v352, %v353
        %v355 = vsel %vm351, %v349, 0.0
        %v356 = vadd.f32 %v354, %v355
        %v357 = vsel %vm351, %v350, 0.0
        %v358 = vadd.f32 %v356, %v357
        %v359 = vrot.slane %v358, 4
        %v360 = vadd.f32 %v358, %v359
        %v361 = vrot.slane %v360, 2
        %v362 = vadd.f32 %v360, %v361
        %v363 = vrot.slane %v362, 1
        %v364 = vadd.f32 %v362, %v363
        %s365 = sld [smem:[#allocation6]]
        %v366 = vstv %s365
        %v367 = vadd.f32 %v364, %v366
        %v368 = vxor.u32 %v367, 2147483648
        %v369 = vmul.f32 %v368, 1.442695
        %v370 = vpow.pop %v369
        %v371 = vadd.f32 %v370, 1.0
        %v372 = vrcp.pop %v371
        %v373 = vmul.f32 %v371, %v372
        %v374 = vsub.f32 1.0, %v373
        %v375 = vmul.f32 %v372, %v374
        %v376 = vadd.f32 %v372, %v375
        %vm377 = vweird.f32 %v371
        %vm378 = vweird.f32 %v372
        %vm379 = vmor %vm377, %vm378
        %v380 = vsel %vm379, %v372, %v376
        %v381 = vand.u32 2147483647, %v371
        %vm382 = vcmp.eq.f32.partialorder %v381, 8.507059e+37
        %v383 = vand.u32 %v371, 2147483648
        %v384 = vor.u32 1.1754944e-38, %v383
        %v385 = vsel %vm382, %v384, %v380
        %v386 = vmul.f32 1.0, %v385
        %v387 = vmul.f32 %v367, %v386
        %v388 = vmul.f32 %v339, %v387
        %v389 = vmul.f32 %v340, %v387
        %v390 = vmul.f32 %v341, %v387
        %v391 = vmul.f32 %v342, %v387
        %v392 = vadd.f32 %v343, %v388
        %v393 = vadd.f32 %v344, %v389
        %v394 = vadd.f32 %v345, %v390
        %v395 = vadd.f32 %v346, %v391
        %vm396 = vcmask 15368
        %v397 = vsel %vm396, %v347, 0.0
        %v398 = vsel %vm396, %v348, 0.0
        %v399 = vadd.f32 %v397, %v398
        %v400 = vsel %vm396, %v349, 0.0
        %v401 = vadd.f32 %v399, %v400
        %v402 = vsel %vm396, %v350, 0.0
        %v403 = vadd.f32 %v401, %v402
        %v404 = vrot.slane %v403, 4
        %v405 = vadd.f32 %v403, %v404
        %v406 = vrot.slane %v405, 2
        %v407 = vadd.f32 %v405, %v406
        %v408 = vrot.slane %v407, 1
        %v409 = vadd.f32 %v407, %v408
        %s410 = sld [smem:[#allocation6 + $0x1]]
        %v411 = vstv %s410
        %v412 = vadd.f32 %v409, %v411
        %v413 = vxor.u32 %v412, 2147483648
        %v414 = vmul.f32 %v413, 1.442695
        %v415 = vpow.pop %v414
        %v416 = vadd.f32 %v415, 1.0
        %v417 = vrcp.pop %v416
        %v418 = vmul.f32 %v416, %v417
        %v419 = vsub.f32 1.0, %v418
        %v420 = vmul.f32 %v417, %v419
        %v421 = vadd.f32 %v417, %v420
        %vm422 = vweird.f32 %v416
        %vm423 = vweird.f32 %v417
        %vm424 = vmor %vm422, %vm423
        %v425 = vsel %vm424, %v417, %v421
        %v426 = vand.u32 2147483647, %v416
        %vm427 = vcmp.eq.f32.partialorder %v426, 8.507059e+37
        %v428 = vand.u32 %v416, 2147483648
        %v429 = vor.u32 1.1754944e-38, %v428
        %v430 = vsel %vm427, %v429, %v425
        %v431 = vmul.f32 1.0, %v430
        %v432 = vmul.f32 %v412, %v431
        %v433 = vmul.f32 %v339, %v432
        %v434 = vmul.f32 %v340, %v432
        %v435 = vmul.f32 %v341, %v432
        %v436 = vmul.f32 %v342, %v432
        %441 = vrot.lane.b32.xlu0 %v433, 127
        %v442 = vpop.permute.xlu0 %441
        %443 = vrot.lane.b32.xlu0 %v434, 127
        %v444 = vpop.permute.xlu0 %443
        %445 = vrot.lane.b32.xlu0 %v435, 127
        %v446 = vpop.permute.xlu0 %445
        %447 = vrot.lane.b32.xlu0 %v436, 127
        %v448 = vpop.permute.xlu0 %447
        %v453 = vadd.f32 %v392, %v442
        %v454 = vadd.f32 %v393, %v444
        %v455 = vadd.f32 %v394, %v446
        %v456 = vadd.f32 %v395, %v448
        %v457 = vmul.f32 %v335, %v325
        %v458 = vmul.f32 %v336, %v328
        %v459 = vmul.f32 %v337, %v331
        %v460 = vmul.f32 %v338, %v334
        %v461 = vsel %vm351, %v457, 0.0
        %v462 = vsel %vm351, %v458, 0.0
        %v463 = vadd.f32 %v461, %v462
        %v464 = vsel %vm351, %v459, 0.0
        %v465 = vadd.f32 %v463, %v464
        %v466 = vsel %vm351, %v460, 0.0
        %v467 = vadd.f32 %v465, %v466
        %v468 = vrot.slane %v467, 4
        %v469 = vadd.f32 %v467, %v468
        %v470 = vrot.slane %v469, 2
        %v471 = vadd.f32 %v469, %v470
        %v472 = vrot.slane %v471, 1
        %v473 = vadd.f32 %v471, %v472
        %v474 = vadd.f32 %v473, %v366
        %v475 = vxor.u32 %v474, 2147483648
        %v476 = vmul.f32 %v475, 1.442695
        %v477 = vpow.pop %v476
        %v478 = vadd.f32 %v477, 1.0
        %v479 = vrcp.pop %v478
        %v480 = vmul.f32 %v478, %v479
        %v481 = vsub.f32 1.0, %v480
        %v482 = vmul.f32 %v479, %v481
        %v483 = vadd.f32 %v479, %v482
        %vm484 = vweird.f32 %v478
        %vm485 = vweird.f32 %v479
        %vm486 = vmor %vm484, %vm485
        %v487 = vsel %vm486, %v479, %v483
        %v488 = vand.u32 2147483647, %v478
        %vm489 = vcmp.eq.f32.partialorder %v488, 8.507059e+37
        %v490 = vand.u32 %v478, 2147483648
        %v491 = vor.u32 1.1754944e-38, %v490
        %v492 = vsel %vm489, %v491, %v487
        %v493 = vmul.f32 1.0, %v492
        %v494 = vmul.f32 %v474, %v493
        %v495 = vmul.f32 %v339, %v494
        %v496 = vmul.f32 %v340, %v494
        %v497 = vmul.f32 %v341, %v494
        %v498 = vmul.f32 %v342, %v494
        %v499 = vadd.f32 %v343, %v495
        %v500 = vadd.f32 %v344, %v496
        %v501 = vadd.f32 %v345, %v497
        %v502 = vadd.f32 %v346, %v498
        %v503 = vsel %vm396, %v457, 0.0
        %v504 = vsel %vm396, %v458, 0.0
        %v505 = vadd.f32 %v503, %v504
        %v506 = vsel %vm396, %v459, 0.0
        %v507 = vadd.f32 %v505, %v506
        %v508 = vsel %vm396, %v460, 0.0
        %v509 = vadd.f32 %v507, %v508
        %v510 = vrot.slane %v509, 4
        %v511 = vadd.f32 %v509, %v510
        %v512 = vrot.slane %v511, 2
        %v513 = vadd.f32 %v511, %v512
        %v514 = vrot.slane %v513, 1
        %v515 = vadd.f32 %v513, %v514
        %v516 = vadd.f32 %v515, %v411
        %v517 = vxor.u32 %v516, 2147483648
        %v518 = vmul.f32 %v517, 1.442695
        %v519 = vpow.pop %v518
        %v520 = vadd.f32 %v519, 1.0
        %v521 = vrcp.pop %v520
        %v522 = vmul.f32 %v520, %v521
        %v523 = vsub.f32 1.0, %v522
        %v524 = vmul.f32 %v521, %v523
        %v525 = vadd.f32 %v521, %v524
        %vm526 = vweird.f32 %v520
        %vm527 = vweird.f32 %v521
        %vm528 = vmor %vm526, %vm527
        %v529 = vsel %vm528, %v521, %v525
        %v530 = vand.u32 2147483647, %v520
        %vm531 = vcmp.eq.f32.partialorder %v530, 8.507059e+37
        %v532 = vand.u32 %v520, 2147483648
        %v533 = vor.u32 1.1754944e-38, %v532
        %v534 = vsel %vm531, %v533, %v529
        %v535 = vmul.f32 1.0, %v534
        %v536 = vmul.f32 %v516, %v535
        %v537 = vmul.f32 %v339, %v536
        %v538 = vmul.f32 %v340, %v536
        %v539 = vmul.f32 %v341, %v536
        %v540 = vmul.f32 %v342, %v536
        %545 = vrot.lane.b32.xlu0 %v537, 127
        %v546 = vpop.permute.xlu0 %545
        %547 = vrot.lane.b32.xlu0 %v538, 127
        %v548 = vpop.permute.xlu0 %547
        %549 = vrot.lane.b32.xlu0 %v539, 127
        %v550 = vpop.permute.xlu0 %549
        %551 = vrot.lane.b32.xlu0 %v540, 127
        %v552 = vpop.permute.xlu0 %551
        %v557 = vadd.f32 %v499, %v546
        %v558 = vadd.f32 %v500, %v548
        %v559 = vadd.f32 %v501, %v550
        %v560 = vadd.f32 %v502, %v552
        %v561 = vadd.f32 %v453, %v557
        %v562 = vadd.f32 %v454, %v558
        %v563 = vadd.f32 %v455, %v559
        %v564 = vadd.f32 %v456, %v560
        %v565 = vxor.u32 %v561, 2147483648
        %v566 = vxor.u32 %v562, 2147483648
        %v567 = vxor.u32 %v563, 2147483648
        %v568 = vxor.u32 %v564, 2147483648
        %v569 = vmul.f32 %v565, 1.442695
        %v570 = vpow.pop %v569
        %v571 = vmul.f32 %v566, 1.442695
        %v572 = vpow.pop %v571
        %v573 = vmul.f32 %v567, 1.442695
        %v574 = vpow.pop %v573
        %v575 = vmul.f32 %v568, 1.442695
        %v576 = vpow.pop %v575
        %v577 = vadd.f32 %v570, 1.0
        %v578 = vadd.f32 %v572, 1.0
        %v579 = vadd.f32 %v574, 1.0
        %v580 = vadd.f32 %v576, 1.0
        %v581 = vrcp.pop %v577
        %v582 = vmul.f32 %v577, %v581
        %v583 = vsub.f32 1.0, %v582
        %v584 = vmul.f32 %v581, %v583
        %v585 = vadd.f32 %v581, %v584
        %vm586 = vweird.f32 %v577
        %vm587 = vweird.f32 %v581
        %vm588 = vmor %vm586, %vm587
        %v589 = vsel %vm588, %v581, %v585
        %v590 = vand.u32 2147483647, %v577
        %vm591 = vcmp.eq.f32.partialorder %v590, 8.507059e+37
        %v592 = vand.u32 %v577, 2147483648
        %v593 = vor.u32 1.1754944e-38, %v592
        %v594 = vsel %vm591, %v593, %v589
        %v595 = vmul.f32 1.0, %v594
        %v596 = vrcp.pop %v578
        %v597 = vmul.f32 %v578, %v596
        %v598 = vsub.f32 1.0, %v597
        %v599 = vmul.f32 %v596, %v598
        %v600 = vadd.f32 %v596, %v599
        %vm601 = vweird.f32 %v578
        %vm602 = vweird.f32 %v596
        %vm603 = vmor %vm601, %vm602
        %v604 = vsel %vm603, %v596, %v600
        %v605 = vand.u32 2147483647, %v578
        %vm606 = vcmp.eq.f32.partialorder %v605, 8.507059e+37
        %v607 = vand.u32 %v578, 2147483648
        %v608 = vor.u32 1.1754944e-38, %v607
        %v609 = vsel %vm606, %v608, %v604
        %v610 = vmul.f32 1.0, %v609
        %v611 = vrcp.pop %v579
        %v612 = vmul.f32 %v579, %v611
        %v613 = vsub.f32 1.0, %v612
        %v614 = vmul.f32 %v611, %v613
        %v615 = vadd.f32 %v611, %v614
        %vm616 = vweird.f32 %v579
        %vm617 = vweird.f32 %v611
        %vm618 = vmor %vm616, %vm617
        %v619 = vsel %vm618, %v611, %v615
        %v620 = vand.u32 2147483647, %v579
        %vm621 = vcmp.eq.f32.partialorder %v620, 8.507059e+37
        %v622 = vand.u32 %v579, 2147483648
        %v623 = vor.u32 1.1754944e-38, %v622
        %v624 = vsel %vm621, %v623, %v619
        %v625 = vmul.f32 1.0, %v624
        %v626 = vrcp.pop %v580
        %v627 = vmul.f32 %v580, %v626
        %v628 = vsub.f32 1.0, %v627
        %v629 = vmul.f32 %v626, %v628
        %v630 = vadd.f32 %v626, %v629
        %vm631 = vweird.f32 %v580
        %vm632 = vweird.f32 %v626
        %vm633 = vmor %vm631, %vm632
        %v634 = vsel %vm633, %v626, %v630
        %v635 = vand.u32 2147483647, %v580
        %vm636 = vcmp.eq.f32.partialorder %v635, 8.507059e+37
        %v637 = vand.u32 %v580, 2147483648
        %v638 = vor.u32 1.1754944e-38, %v637
        %v639 = vsel %vm636, %v638, %v634
        %v640 = vmul.f32 1.0, %v639
        %641 = vst.msk [vmem:[%s298] sm:$0xff] %vm351, %v595
        %642 = vst.msk [vmem:[%s298 + $0x8] sm:$0xff] %vm351, %v610
        %643 = vst.msk [vmem:[%s298 + $0x10] sm:$0xff] %vm351, %v625
        %644 = vst.msk [vmem:[%s298 + $0x18] sm:$0xff] %vm351, %v640
        %646 = vset.pattern.permute.xlu0 0
        %647 = vperm.xlu0 %646, %v595
        %v648 = vpop.permute.xlu0 %647
        %651 = vset.pattern.permute.xlu0 0
        %652 = vperm.xlu0 %651, %v610
        %v653 = vpop.permute.xlu0 %652
        %656 = vset.pattern.permute.xlu0 0
        %657 = vperm.xlu0 %656, %v625
        %v658 = vpop.permute.xlu0 %657
        %661 = vset.pattern.permute.xlu0 0
        %662 = vperm.xlu0 %661, %v640
        %v663 = vpop.permute.xlu0 %662
        %v665 = vmul.f32 %v299, %v648
        %v666 = vmul.f32 %v300, %v648
        %v667 = vmul.f32 %v301, %v653
        %v668 = vmul.f32 %v302, %v653
        %v669 = vmul.f32 %v303, %v658
        %v670 = vmul.f32 %v304, %v658
        %v671 = vmul.f32 %v305, %v663
        %v672 = vmul.f32 %v306, %v663
        %v673 = vadd.f32 %v665, %v667
        %v674 = vadd.f32 %v673, %v669
        %v675 = vadd.f32 %v674, %v671
        %v676 = vrot.slane %v675, 4
        %v677 = vadd.f32 %v675, %v676
        %v678 = vrot.slane %v677, 2
        %v679 = vadd.f32 %v677, %v678
        %v680 = vrot.slane %v679, 1
        %v681 = vadd.f32 %v679, %v680
        %v682 = vadd.f32 %v666, %v668
        %v683 = vadd.f32 %v682, %v670
        %v684 = vadd.f32 %v683, %v672
        %v685 = vrot.slane %v684, 4
        %v686 = vadd.f32 %v684, %v685
        %v687 = vrot.slane %v686, 2
        %v688 = vadd.f32 %v686, %v687
        %v689 = vrot.slane %v688, 1
        %v690 = vadd.f32 %v688, %v689
        %v691 = vmul.f32 %v681, 0.03125
        %v692 = vmul.f32 %v690, 0.03125
        %v695 = vrot.slane %v692, 7
        %vm696 = vcmask 1040384
        %v697 = vsel %vm696, %v691, %v695
        %v699 = vlaneseq
        %vm700 = vcmp.ge.s32.totalorder %v699, 0
        %vm701 = vcmp.lt.s32.totalorder %v699, 256
        %vm702 = vmand %vm700, %vm701
        %703 = vst.msk [vmem:[%s293] ss:$2 sm:$0x3] %vm702, %v697
        %v704 = vmax.f32 %v665, %v669
        %v705 = vmax.f32 %v667, %v671
        %v706 = vmax.f32 %v704, %v705
        %v707 = vrot.slane %v706, 4
        %v708 = vmax.f32 %v706, %v707
        %v709 = vrot.slane %v708, 2
        %v710 = vmax.f32 %v708, %v709
        %v711 = vrot.slane %v710, 1
        %v712 = vmax.f32 %v710, %v711
        %v713 = vmax.f32 %v666, %v670
        %v714 = vmax.f32 %v668, %v672
        %v715 = vmax.f32 %v713, %v714
        %v716 = vrot.slane %v715, 4
        %v717 = vmax.f32 %v715, %v716
        %v718 = vrot.slane %v717, 2
        %v719 = vmax.f32 %v717, %v718
        %v720 = vrot.slane %v719, 1
        %v721 = vmax.f32 %v719, %v720
        %v724 = vrot.slane %v721, 7
        %v725 = vsel %vm696, %v712, %v724
        %s727 = scalar_lea.vmem %s293, 1 [#allocation7]
        %728 = vst.msk [vmem:[%s727] ss:$2 sm:$0x3] %vm702, %v725
        %p729 = scmp.lt.s32.totalorder %s25, 1
        %s730 = scalar_select %p729, %s25, 1
        %s731 = smul.addr %s730, 4
        %s732 = smul.addr %s731, 8
        %s733 = scalar_lea.vmem %s5, %s732
        %s734 = sand.u32 %s169, 1
        %s735 = scalar_lea.sflag [#allocation4], %s734
        %s736 = sand.u32 %s169, 1
        %s737 = smul.addr %s736, 4
        %s738 = scalar_lea.vmem [#allocation7], %s737
        // Predicated region
        $region49: #{tpu_custom_call.1} parent=39 // pred_check
          %p739 = pneg %p153
        $region50: #{tpu_custom_call.1} parent=39 // pred_check_branch
          %741 = sbr.rel (%p739) target = $region52
        $region51: #{tpu_custom_call.1} parent=39 // pred_region
          _
        $region52: #{tpu_custom_call.1} parent=39 // pred_fallthru
          _
        // Predicated region
        $region53: #{tpu_custom_call.1} parent=39 // pred_check
          %p742 = pneg %p179
        $region54: #{tpu_custom_call.1} parent=39 // pred_check_branch
          %744 = sbr.rel (%p742) target = $region56
        $region55: #{tpu_custom_call.1} parent=39 // pred_region
          %746 = vsyncadd %s735, 0
          %s747 = smul.addr %s25, 2
          %s748 = smul.addr %s747, 2
          %s749 = scalar_lea.hbm %s6, %s748
          %s751 = sshll.u32 %s738, 4
          %s752 = int_to_ptr.vmem [resolvable:$true] %s751
          %s753 = sshll.u32 %s749, 4
          %s754 = int_to_ptr.hbm [resolvable:$true] %s753
          %756 = dma.vmem_to_hbm [thread:$0]  %s752, 64, %s754, %s735
        $region56: #{tpu_custom_call.1} parent=39 // pred_fallthru
          _
      $region40: #{tpu_custom_call.1} parent=5 // pred_fallthru
        _
      %p757 = scmp.le.s32.totalorder 2, %s20
      // Predicated region
      $region57: #{tpu_custom_call.1} parent=5 // pred_check
        %p758 = pneg %p757
      $region58: #{tpu_custom_call.1} parent=5 // pred_check_branch
        %760 = sbr.rel (%p758) target = $region60
      $region59: #{tpu_custom_call.1} parent=5 // pred_region
        %s761 = ssub.s32 %s20, 2
        // Predicated region
        $region61: #{tpu_custom_call.1} parent=59 // pred_check
          %p762 = pneg %p159
        $region62: #{tpu_custom_call.1} parent=59 // pred_check_branch
          %764 = sbr.rel (%p762) target = $region64
        $region63: #{tpu_custom_call.1} parent=59 // pred_region
          %p765 = scmp.lt.s32.totalorder %s26, 1
          %s766 = scalar_select %p765, %s26, 1
          %s767 = smul.addr %s766, 4
          %s768 = smul.addr %s767, 8
          %s769 = scalar_lea.vmem %s5, %s768
        $region64: #{tpu_custom_call.1} parent=59 // pred_fallthru
          _
        // Predicated region
        $region65: #{tpu_custom_call.1} parent=59 // pred_check
          %p770 = pneg %p185
        $region66: #{tpu_custom_call.1} parent=59 // pred_check_branch
          %772 = sbr.rel (%p770) target = $region68
        $region67: #{tpu_custom_call.1} parent=59 // pred_region
          %s773 = sand.u32 %s170, 1
          %s774 = scalar_lea.sflag [#allocation4], %s773
          %s775 = sand.u32 %s170, 1
          %s776 = smul.addr %s775, 4
          %s777 = scalar_lea.vmem [#allocation7], %s776
          %779 = dma.done %s774, 64
        $region68: #{tpu_custom_call.1} parent=59 // pred_fallthru
          _
      $region60: #{tpu_custom_call.1} parent=5 // pred_fallthru
        _
    $region6: #{tpu_custom_call.1} parent=1 // loop_footer
      %s24 = sadd.s32 1, %s20
    $region7: #{tpu_custom_call.1} parent=1 // loop_footer_branch
      %19 = sbr.rel target = $region3
    $region8: #{tpu_custom_call.1} parent=1 // loop_exit
      _
    %780 = vsyncpa [#allocation3], 1
    %s781 = scalar_lea.sflag [#allocation3], 1
    %782 = vsyncpa %s781, 1
    %783 = vsyncpa [#allocation4], 1
    %s784 = scalar_lea.sflag [#allocation4], 1
    %785 = vsyncpa %s784, 1
    %786 = vsyncpa [#allocation5], 1
    %s787 = scalar_lea.sflag [#allocation5], 1
    %788 = vsyncpa %s787, 1

</llo_original>
